<compile_context>
chip_gen: v5e
topology: v5e:2x2
jax: 0.10.0
libtpu: 0.0.40
codegen_flags: <defaults>
</compile_context>

<pallas_src>
import functools

import jax
import jax.numpy as jnp
from jax import lax
from jax.experimental import pallas as pl
from jax.experimental.pallas import tpu as pltpu


def _smooth_l1(diff):
    """SmoothL1 (beta=1.0), elementwise."""
    absd = jnp.abs(diff)
    return jnp.where(absd < 1.0, 0.5 * diff * diff, absd - 0.5)


def _disc_head(x, slab_ref, b2_ref, d_in):
    """2-layer MLP discriminator: (rows, D) -> (rows, 1).

    slab_ref rows [0, D) = w1, row D = b1, row D+1 = w2 (lane-dense (1, H)).
    """
    w1 = slab_ref[0:d_in, :]                 # (D, H)
    b1 = slab_ref[d_in:d_in + 1, :]          # (1, H)
    w2 = slab_ref[d_in + 1:d_in + 2, :]      # (1, H)
    h = jnp.dot(x, w1, preferred_element_type=jnp.float32) + b1
    h = jnp.maximum(h, 0.0)
    # N=1 output layer on VPU (mul) + XLU (lane reduce): no 1-wide MXU push.
    return jnp.sum(h * w2, axis=1, keepdims=True) + b2_ref[0, 0]   # (rows, 1)


def _fused_kernel(pred_ref, real_ref, mask_ref, slab_ref, b2_ref,
                  gen_ref, dis_ref, x_ref, *, batch, d_in):
    """One launch producing both losses.

    x scratch rows: [0,B)=unmasked pred (gen), [B,2B)=masked pred (fake),
    [2B,3B)=masked real. Targets: 1, 0, 1.
    """
    pred = pred_ref[...]
    real = real_ref[...]
    m = mask_ref[...]
    # In-kernel masking + stacking (static-slice stores into VMEM scratch).
    x_ref[0:batch, :] = pred
    x_ref[batch:2 * batch, :] = pred * m
    x_ref[2 * batch:3 * batch, :] = real * m

    d = _disc_head(x_ref[...], slab_ref, b2_ref, d_in)      # (3B, 1) f32

    row = lax.broadcasted_iota(jnp.int32, d.shape, 0)       # (3B, 1)
    is_fake = jnp.logical_and(row >= batch, row < 2 * batch)
    target = jnp.where(is_fake, 0.0, 1.0)
    per_row = _smooth_l1(d - target)                        # (3B, 1)

    gen_w = (row < batch).astype(jnp.float32)
    dis_w = 1.0 - gen_w
    # gen: mean over B rows; dis: mean over 2B rows == (loss_D1 + loss_D2)/2.
    gen_ref[0, 0] = 0.01 * jnp.sum(per_row * gen_w) / float(batch)
    dis_ref[0, 0] = 0.01 * jnp.sum(per_row * dis_w) / float(2 * batch)


def _gen_kernel(pred_ref, slab_ref, b2_ref, out_ref, *, d_in):
    """Gen branch only: SmoothL1(dis(unmasked pred), 1) * 0.01."""
    d = _disc_head(pred_ref[...], slab_ref, b2_ref, d_in)   # (B, 1)
    out_ref[0, 0] = 0.01 * jnp.mean(_smooth_l1(d - 1.0))


def _dis_kernel(pred_ref, real_ref, mask_ref, slab_ref, b2_ref, out_ref, x_ref,
                *, batch, d_in):
    """Dis branch only: stacked [masked pred ; masked real], targets [0 ; 1]."""
    m = mask_ref[...]
    x_ref[0:batch, :] = pred_ref[...] * m
    x_ref[batch:2 * batch, :] = real_ref[...] * m
    d = _disc_head(x_ref[...], slab_ref, b2_ref, d_in)      # (2B, 1)
    row = lax.broadcasted_iota(jnp.int32, d.shape, 0)
    target = (row >= batch).astype(jnp.float32)
    out_ref[0, 0] = 0.01 * jnp.mean(_smooth_l1(d - target))


_VMEM = functools.partial(pl.BlockSpec, memory_space=pltpu.MemorySpace.VMEM)
_SMEM = functools.partial(pl.BlockSpec, memory_space=pltpu.MemorySpace.SMEM)
_CP = pltpu.CompilerParams(vmem_limit_bytes=32 * 1024 * 1024)


def _cost(rows, d_in, hidden, n_inputs):
    return pl.CostEstimate(
        flops=2 * rows * d_in * hidden + 5 * rows * hidden,
        transcendentals=0,
        bytes_accessed=4 * (n_inputs * rows * d_in + (d_in + 2) * hidden + 4),
    )


def _flat_inputs(pred_pos, tensors):
    label = tensors["label"]
    B, L = label.shape
    C = pred_pos.shape[-1]
    D = L * C
    pred = pred_pos.reshape(B, D)
    real = tensors["cen_pos"].reshape(B, D)
    # Tiny (B, D) 0/1 mask (same element order as the flattened coords).
    mask = jnp.repeat((label > 0).astype(pred.dtype), C, axis=1)
    return pred, real, mask, B, D


def gan_loss_both(pred_pos, tensors, params):
    """Fused: one pallas_call returning (loss_gen, loss_dis), both * 0.01."""
    pred, real, mask, B, D = _flat_inputs(pred_pos, tensors)
    slab, b2 = params["slab"], params["b2"]
    H = slab.shape[1]
    gen, dis = pl.pallas_call(
        functools.partial(_fused_kernel, batch=B, d_in=D),
        out_shape=(jax.ShapeDtypeStruct((1, 1), jnp.float32),
                   jax.ShapeDtypeStruct((1, 1), jnp.float32)),
        in_specs=[_VMEM(), _VMEM(), _VMEM(), _VMEM(), _SMEM()],
        out_specs=(_SMEM(), _SMEM()),
        scratch_shapes=[pltpu.VMEM((3 * B, D), pred.dtype)],
        compiler_params=_CP,
        cost_estimate=_cost(3 * B, D, H, 3),
    )(pred, real, mask, slab, b2)
    return gen[0, 0], dis[0, 0]


def gan_loss(pred_pos, tensors, params, loss_type="gen"):
    """JAX/Pallas equivalent of GANLoss.forward (returns loss_GAN * 0.01)."""
    slab, b2 = params["slab"], params["b2"]
    H = slab.shape[1]
    if loss_type == "gen":
        label = tensors["label"]
        B, L = label.shape
        D = L * pred_pos.shape[-1]
        pred = pred_pos.reshape(B, D)                 # unmasked, per original
        out = pl.pallas_call(
            functools.partial(_gen_kernel, d_in=D),
            out_shape=jax.ShapeDtypeStruct((1, 1), jnp.float32),
            in_specs=[_VMEM(), _VMEM(), _SMEM()],
            out_specs=_SMEM(),
            compiler_params=_CP,
            cost_estimate=_cost(B, D, H, 1),
        )(pred, slab, b2)
        return out[0, 0]

    pred, real, mask, B, D = _flat_inputs(pred_pos, tensors)
    out = pl.pallas_call(
        functools.partial(_dis_kernel, batch=B, d_in=D),
        out_shape=jax.ShapeDtypeStruct((1, 1), jnp.float32),
        in_specs=[_VMEM(), _VMEM(), _VMEM(), _VMEM(), _SMEM()],
        out_specs=_SMEM(),
        scratch_shapes=[pltpu.VMEM((2 * B, D), pred.dtype)],
        compiler_params=_CP,
        cost_estimate=_cost(2 * B, D, H, 3),
    )(pred, real, mask, slab, b2)
    return out[0, 0]


def init_params(key, d_in, hidden):
    k1, k2, k3, k4 = jax.random.split(key, 4)
    w1 = jax.random.normal(k1, (d_in, hidden), jnp.float32) * 0.1
    b1 = jax.random.normal(k2, (1, hidden), jnp.float32) * 0.01
    w2 = jax.random.normal(k3, (1, hidden), jnp.float32) * 0.1   # lane-dense
    b2 = jax.random.normal(k4, (1, 1), jnp.float32) * 0.01
    # Single parameter slab: rows [0,D)=w1, row D=b1, row D+1=w2  -> 1 VMEM DMA.
    return {"slab": jnp.concatenate([w1, b1, w2], axis=0), "b2": b2}


if __name__ == "__main__":
    # batch, label_len, coord dim, hidden width (hidden kept lane-dense = 128).
    B, L, C, H = 2, 8, 2, 128
    key = jax.random.PRNGKey(0)
    k_pred, k_real, k_label, k_param = jax.random.split(key, 4)

    pred_pos = jax.random.normal(k_pred, (B, L, C), jnp.float32)
    cen_pos = jax.random.normal(k_real, (B, L, C), jnp.float32)
    label = jax.random.randint(k_label, (B, L), 0, 3).astype(jnp.int32)
    params = init_params(k_param, L * C, H)

    tensors = {"label": label, "cen_pos": cen_pos}

    # Fused path: both losses from ONE pallas_call (the perf-review change).
    loss_gen_f, loss_dis_f = gan_loss_both(pred_pos, tensors, params)
    # Per-branch API matching the original GANLoss.forward signature.
    loss_gen = gan_loss(pred_pos, tensors, params, loss_type="gen")
    loss_dis = gan_loss(pred_pos, tensors, params, loss_type="dis")

    jax.block_until_ready((loss_gen_f, loss_dis_f, loss_gen, loss_dis))
    print("KERNEL_OK")
</pallas_src>

<mosaic_0001>
module attributes {stable_mosaic.version = 11 : i64} {
  func.func @_fused_kernel(%arg0: memref<2x16xf32, #tpu.memory_space<vmem>>, %arg1: memref<2x16xf32, #tpu.memory_space<vmem>>, %arg2: memref<2x16xf32, #tpu.memory_space<vmem>>, %arg3: memref<18x128xf32, #tpu.memory_space<vmem>>, %arg4: memref<1x1xf32, #tpu.memory_space<smem>>, %arg5: memref<1x1xf32, #tpu.memory_space<smem>>, %arg6: memref<1x1xf32, #tpu.memory_space<smem>>, %arg7: memref<6x16xf32, #tpu.memory_space<vmem>>) attributes {dimension_semantics = [], scalar_prefetch = 0 : i64, scratch_operands = 1 : i64, tpu.core_type = #tpu.core_type<tc>} {
    %c0 = arith.constant 0 : index
    %c0_0 = arith.constant 0 : index
    %0 = vector.load %arg0[%c0, %c0_0] : memref<2x16xf32, #tpu.memory_space<vmem>>, vector<2x16xf32>
    %c0_1 = arith.constant 0 : index
    %c0_2 = arith.constant 0 : index
    %1 = vector.load %arg1[%c0_1, %c0_2] : memref<2x16xf32, #tpu.memory_space<vmem>>, vector<2x16xf32>
    %c0_3 = arith.constant 0 : index
    %c0_4 = arith.constant 0 : index
    %2 = vector.load %arg2[%c0_3, %c0_4] : memref<2x16xf32, #tpu.memory_space<vmem>>, vector<2x16xf32>
    %c0_5 = arith.constant 0 : index
    %c0_6 = arith.constant 0 : index
    %3 = vector.load %arg7[%c0_5, %c0_6] : memref<6x16xf32, #tpu.memory_space<vmem>>, vector<2x16xf32>
    tpu.vector_store %arg7[%c0_5, %c0_6], %0 {strides = array<i32>} : memref<6x16xf32, #tpu.memory_space<vmem>>, vector<2x16xf32>,
    %4 = arith.mulf %0, %2 : vector<2x16xf32>
    %c2 = arith.constant 2 : index
    %c0_7 = arith.constant 0 : index
    %5 = vector.load %arg7[%c2, %c0_7] : memref<6x16xf32, #tpu.memory_space<vmem>>, vector<2x16xf32>
    tpu.vector_store %arg7[%c2, %c0_7], %4 {strides = array<i32>} : memref<6x16xf32, #tpu.memory_space<vmem>>, vector<2x16xf32>,
    %6 = arith.mulf %1, %2 : vector<2x16xf32>
    %c4 = arith.constant 4 : index
    %c0_8 = arith.constant 0 : index
    %7 = vector.load %arg7[%c4, %c0_8] : memref<6x16xf32, #tpu.memory_space<vmem>>, vector<2x16xf32>
    tpu.vector_store %arg7[%c4, %c0_8], %6 {strides = array<i32>} : memref<6x16xf32, #tpu.memory_space<vmem>>, vector<2x16xf32>,
    %c0_9 = arith.constant 0 : index
    %c0_10 = arith.constant 0 : index
    %8 = vector.load %arg7[%c0_9, %c0_10] : memref<6x16xf32, #tpu.memory_space<vmem>>, vector<6x16xf32>
    %c0_11 = arith.constant 0 : index
    %c0_12 = arith.constant 0 : index
    %9 = vector.load %arg3[%c0_11, %c0_12] : memref<18x128xf32, #tpu.memory_space<vmem>>, vector<16x128xf32>
    %c16 = arith.constant 16 : index
    %c0_13 = arith.constant 0 : index
    %10 = vector.load %arg3[%c16, %c0_13] : memref<18x128xf32, #tpu.memory_space<vmem>>, vector<1x128xf32>
    %c17 = arith.constant 17 : index
    %c0_14 = arith.constant 0 : index
    %11 = vector.load %arg3[%c17, %c0_14] : memref<18x128xf32, #tpu.memory_space<vmem>>, vector<1x128xf32>
    %cst = arith.constant dense<0.000000e+00> : vector<6x128xf32>
    %12 = tpu.matmul %8, %9, %cst {dimension_numbers = #tpu.dot_dimension_numbers<[1], [0], [0], [1], [0, 0, 1, 1], [], []>} : vector<6x16xf32>, vector<16x128xf32>, vector<6x128xf32> -> vector<6x128xf32>
    %13 = vector.broadcast %10 : vector<1x128xf32> to vector<6x128xf32>
    %14 = arith.addf %12, %13 : vector<6x128xf32>
    %cst_15 = arith.constant 0.000000e+00 : f32
    %15 = vector.broadcast %cst_15 : f32 to vector<6x128xf32>
    %16 = arith.maximumf %14, %15 : vector<6x128xf32>
    %17 = vector.broadcast %11 : vector<1x128xf32> to vector<6x128xf32>
    %18 = arith.mulf %16, %17 : vector<6x128xf32>
    %cst_16 = arith.constant dense<0.000000e+00> : vector<6xf32>
    %19 = vector.multi_reduction <add>, %18, %cst_16 [1] : vector<6x128xf32> to vector<6xf32>
    %20 = vector.shape_cast %19 : vector<6xf32> to vector<6x1xf32>
    %c0_17 = arith.constant 0 : index
    %c0_18 = arith.constant 0 : index
    %21 = memref.load %arg4[%c0_17, %c0_18] : memref<1x1xf32, #tpu.memory_space<smem>>
    %22 = vector.broadcast %21 : f32 to vector<6x1xf32>
    %23 = arith.addf %20, %22 : vector<6x1xf32>
    %24 = tpu.iota {dimensions = array<i32: 0>} : vector<6x1xi32>
    %c2_i32 = arith.constant 2 : i32
    %25 = vector.broadcast %c2_i32 : i32 to vector<6x1xi32>
    %26 = arith.cmpi sge, %24, %25 : vector<6x1xi32>
    %c4_i32 = arith.constant 4 : i32
    %27 = vector.broadcast %c4_i32 : i32 to vector<6x1xi32>
    %28 = arith.cmpi slt, %24, %27 : vector<6x1xi32>
    %29 = arith.andi %26, %28 : vector<6x1xi1>
    %cst_19 = arith.constant 0.000000e+00 : f32
    %cst_20 = arith.constant 1.000000e+00 : f32
    %30 = vector.broadcast %cst_19 : f32 to vector<6x1xf32>
    %31 = vector.broadcast %cst_20 : f32 to vector<6x1xf32>
    %32 = arith.select %29, %30, %31 : vector<6x1xi1>, vector<6x1xf32>
    %33 = arith.subf %23, %32 : vector<6x1xf32>
    %34 = math.absf %33 : vector<6x1xf32>
    %cst_21 = arith.constant 1.000000e+00 : f32
    %35 = vector.broadcast %cst_21 : f32 to vector<6x1xf32>
    %36 = arith.cmpf olt, %34, %35 : vector<6x1xf32>
    %cst_22 = arith.constant 5.000000e-01 : f32
    %37 = vector.broadcast %cst_22 : f32 to vector<6x1xf32>
    %38 = arith.mulf %37, %33 : vector<6x1xf32>
    %39 = arith.mulf %38, %33 : vector<6x1xf32>
    %cst_23 = arith.constant 5.000000e-01 : f32
    %40 = vector.broadcast %cst_23 : f32 to vector<6x1xf32>
    %41 = arith.subf %34, %40 : vector<6x1xf32>
    %42 = arith.select %36, %39, %41 : vector<6x1xi1>, vector<6x1xf32>
    %c2_i32_24 = arith.constant 2 : i32
    %43 = vector.broadcast %c2_i32_24 : i32 to vector<6x1xi32>
    %44 = arith.cmpi slt, %24, %43 : vector<6x1xi32>
    %45 = arith.extui %44 : vector<6x1xi1> to vector<6x1xi32>
    %46 = arith.sitofp %45 : vector<6x1xi32> to vector<6x1xf32>
    %cst_25 = arith.constant 1.000000e+00 : f32
    %47 = vector.broadcast %cst_25 : f32 to vector<6x1xf32>
    %48 = arith.subf %47, %46 : vector<6x1xf32>
    %49 = arith.mulf %42, %46 : vector<6x1xf32>
    %50 = vector.shape_cast %49 : vector<6x1xf32> to vector<1x6x1xf32>
    %cst_26 = arith.constant dense<0.000000e+00> : vector<1xf32>
    %51 = vector.multi_reduction <add>, %50, %cst_26 [1, 2] : vector<1x6x1xf32> to vector<1xf32>
    %52 = vector.shape_cast %51 : vector<1xf32> to vector<1x1x1xf32>
    %53 = vector.extract %52[0, 0, 0] : f32 from vector<1x1x1xf32>
    %cst_27 = arith.constant 0.00999999977 : f32
    %54 = arith.mulf %cst_27, %53 : f32
    %cst_28 = arith.constant 2.000000e+00 : f32
    %55 = arith.divf %54, %cst_28 : f32
    %c0_29 = arith.constant 0 : index
    %c0_30 = arith.constant 0 : index
    %56 = memref.load %arg5[%c0_29, %c0_30] : memref<1x1xf32, #tpu.memory_space<smem>>
    memref.store %55, %arg5[%c0_29, %c0_30] : memref<1x1xf32, #tpu.memory_space<smem>>
    %57 = arith.mulf %42, %48 : vector<6x1xf32>
    %58 = vector.shape_cast %57 : vector<6x1xf32> to vector<1x6x1xf32>
    %cst_31 = arith.constant dense<0.000000e+00> : vector<1xf32>
    %59 = vector.multi_reduction <add>, %58, %cst_31 [1, 2] : vector<1x6x1xf32> to vector<1xf32>
    %60 = vector.shape_cast %59 : vector<1xf32> to vector<1x1x1xf32>
    %61 = vector.extract %60[0, 0, 0] : f32 from vector<1x1x1xf32>
    %cst_32 = arith.constant 0.00999999977 : f32
    %62 = arith.mulf %cst_32, %61 : f32
    %cst_33 = arith.constant 4.000000e+00 : f32
    %63 = arith.divf %62, %cst_33 : f32
    %c0_34 = arith.constant 0 : index
    %c0_35 = arith.constant 0 : index
    %64 = memref.load %arg6[%c0_34, %c0_35] : memref<1x1xf32, #tpu.memory_space<smem>>
    memref.store %63, %arg6[%c0_34, %c0_35] : memref<1x1xf32, #tpu.memory_space<smem>>
    return
  }
}

</mosaic_0001>

<llo_original>
// kernel: tpu_custom_call.1
$region0: #{tpu_custom_call.1}
  #allocation0 [shape = 'u32[]', space=smem, size = 0x4, offset = 0x4, fixed_abs, tag = 'smem constant byte address 0x4 - core index']
  #allocation1 [shape = 'u32[72,128]{1,0:T(1,128)}', space=vmem, size = 0x9000, scoped, tag = 'internal scratch']
  #allocation2 [shape = 'f32[6,16]{1,0:T(8,128)}', space=vmem, size = 0x1000, scoped, tag = 'scratch operand']
  #allocation3 [shape = 'f32[1,1]{1,0:T(1,128)S(6)}', space=smem, size = 0x200, scoped, tag = 'scoped memory for tpu_custom_call.1']
  %s0 = inlined_call_operand.vmem [shape: f32[2,16], index: 0, kind: input, shape index: {}]
  %s1 = inlined_call_operand.hbm [shape: f32[2,16], index: 1, kind: input, shape index: {}]
  %s2 = inlined_call_operand.hbm [shape: f32[2,16], index: 2, kind: input, shape index: {}]
  %s3 = inlined_call_operand.hbm [shape: f32[18,128], index: 3, kind: input, shape index: {}]
  %s4 = inlined_call_operand.<no memory space> [shape: f32[1,1], index: 4, kind: input, shape index: {}]
  %s5 = inlined_call_operand.hbm [shape: f32[1,1], index: 5, kind: output, shape index: {0}]
  %s6 = inlined_call_operand.hbm [shape: f32[1,1], index: 6, kind: output, shape index: {1}]
  %7 = xla_tuple %s5, %s6
  %s8 = sld [smem:[#allocation0]]
  $region50: #{tpu_custom_call.1} parent=0
    _
  %s10 = ssub.s32 1, %s8
  %s11 = scalar_select 0, %s10, %s8
  %12 = sst [smem:[#allocation3]] %s4
  $region1: #{tpu_custom_call.1} parent=0
    #allocation4 [shape = 'u8[1024]{0}', space=vmem, size = 0x400, scoped, tag = 'input window, operand 1, single buffered']
    #allocation5 [shape = 's32[1]{0}', space=sflag, size = 0x4, scoped, tag = 'scoped memory for tpu_custom_call.1']
    #allocation6 [shape = 's32[1]{0}', space=sflag, size = 0x4, scoped, tag = 'scoped memory for tpu_custom_call.1']
    #allocation7 [shape = 'u8[1024]{0}', space=vmem, size = 0x400, scoped, tag = 'input window, operand 2, single buffered']
    #allocation8 [shape = 's32[1]{0}', space=sflag, size = 0x4, scoped, tag = 'scoped memory for tpu_custom_call.1']
    #allocation9 [shape = 'u8[12288]{0}', space=vmem, size = 0x3000, scoped, tag = 'input window, operand 3, single buffered']
    #allocation10 [shape = 'u8[512]{0}', space=smem, size = 0x200, scoped, tag = 'output window, operand 0, single buffered']
    #allocation11 [shape = 'u8[512]{0}', space=smem, size = 0x200, scoped, tag = 'output window, operand 1, single buffered']
    #allocation12 [shape = 's32[1]{0}', space=sflag, size = 0x4, scoped, tag = 'scoped memory for tpu_custom_call.1']
    %13 = vsyncpa [#allocation5], 0
    %14 = vsyncpa [#allocation8], 0
    %15 = vsyncpa [#allocation6], 0
    %16 = vsyncpa [#allocation12], 0
    // Predicated region
    $region2: #{tpu_custom_call.1} parent=1 // pred_check
      _
    $region3: #{tpu_custom_call.1} parent=1 // pred_check_branch
      %18 = sbr.rel (0) target = $region5
    $region4: #{tpu_custom_call.1} parent=1 // pred_region
      _
    $region5: #{tpu_custom_call.1} parent=1 // pred_fallthru
      _
    // Predicated region
    $region6: #{tpu_custom_call.1} parent=1 // pred_check
      _
    $region7: #{tpu_custom_call.1} parent=1 // pred_check_branch
      %20 = sbr.rel (0) target = $region9
    $region8: #{tpu_custom_call.1} parent=1 // pred_region
      %22 = vsyncadd [#allocation5], 0
      %s24 = sshll.u32 %s1, 4
      %s25 = int_to_ptr.hbm [resolvable:$true] %s24
      %s26 = sshll.u32 [#allocation4], 4
      %s27 = int_to_ptr.vmem [resolvable:$true] %s26
      %29 = dma.hbm_to_vmem [thread:$0]  %s25, 32, %s27, [#allocation5]
    $region9: #{tpu_custom_call.1} parent=1 // pred_fallthru
      _
    // Predicated region
    $region10: #{tpu_custom_call.1} parent=1 // pred_check
      _
    $region11: #{tpu_custom_call.1} parent=1 // pred_check_branch
      %31 = sbr.rel (0) target = $region13
    $region12: #{tpu_custom_call.1} parent=1 // pred_region
      %33 = vsyncadd [#allocation8], 0
      %s35 = sshll.u32 %s2, 4
      %s36 = int_to_ptr.hbm [resolvable:$true] %s35
      %s37 = sshll.u32 [#allocation7], 4
      %s38 = int_to_ptr.vmem [resolvable:$true] %s37
      %40 = dma.hbm_to_vmem [thread:$0]  %s36, 32, %s38, [#allocation8]
    $region13: #{tpu_custom_call.1} parent=1 // pred_fallthru
      _
    // Predicated region
    $region14: #{tpu_custom_call.1} parent=1 // pred_check
      _
    $region15: #{tpu_custom_call.1} parent=1 // pred_check_branch
      %42 = sbr.rel (0) target = $region17
    $region16: #{tpu_custom_call.1} parent=1 // pred_region
      %44 = vsyncadd [#allocation8], 0
      %s45 = sshll.u32 %s3, 4
      %s46 = int_to_ptr.hbm [resolvable:$true] %s45
      %s47 = sshll.u32 [#allocation9], 4
      %s48 = int_to_ptr.vmem [resolvable:$true] %s47
      %53 = dma.hbm_to_vmem [thread:$0]  %s46, 384, %s48, [#allocation8], 128, 128, 8
    $region17: #{tpu_custom_call.1} parent=1 // pred_fallthru
      _
    // Predicated region
    $region18: #{tpu_custom_call.1} parent=1 // pred_check
      _
    $region19: #{tpu_custom_call.1} parent=1 // pred_check_branch
      %55 = sbr.rel (0) target = $region21
    $region20: #{tpu_custom_call.1} parent=1 // pred_region
      _
    $region21: #{tpu_custom_call.1} parent=1 // pred_fallthru
      _
    // Predicated region
    $region22: #{tpu_custom_call.1} parent=1 // pred_check
      _
    $region23: #{tpu_custom_call.1} parent=1 // pred_check_branch
      %57 = sbr.rel (0) target = $region25
    $region24: #{tpu_custom_call.1} parent=1 // pred_region
      %59 = dma.done [#allocation5], 32
    $region25: #{tpu_custom_call.1} parent=1 // pred_fallthru
      _
    // Predicated region
    $region26: #{tpu_custom_call.1} parent=1 // pred_check
      _
    $region27: #{tpu_custom_call.1} parent=1 // pred_check_branch
      %61 = sbr.rel (0) target = $region29
    $region28: #{tpu_custom_call.1} parent=1 // pred_region
      %63 = dma.done [#allocation8], 32
    $region29: #{tpu_custom_call.1} parent=1 // pred_fallthru
      _
    // Predicated region
    $region30: #{tpu_custom_call.1} parent=1 // pred_check
      _
    $region31: #{tpu_custom_call.1} parent=1 // pred_check_branch
      %65 = sbr.rel (0) target = $region33
    $region32: #{tpu_custom_call.1} parent=1 // pred_region
      %67 = dma.done [#allocation8], 384
    $region33: #{tpu_custom_call.1} parent=1 // pred_fallthru
      _
    %v68 = vld [vmem:[%s0] sm:$0x3]
    %v69 = vld [vmem:[#allocation4] sm:$0x3]
    %v70 = vld [vmem:[#allocation7] sm:$0x3]
    %vm71 = vcmask 123904
    %72 = vst.msk [vmem:[#allocation2] sm:$0x3] %vm71, %v68
    %v73 = vmul.f32 %v68, %v70
    %74 = vst.msk [vmem:[#allocation2 + $0x2] sm:$0x3] %vm71, %v73
    %v75 = vmul.f32 %v69, %v70
    %76 = vst.msk [vmem:[#allocation2 + $0x4] sm:$0x3] %vm71, %v75
    %v77 = vld [vmem:[#allocation2] sm:$0x3f]
    %v78 = vld [vmem:[#allocation9] sm:$0xff]
    %v79 = vld [vmem:[#allocation9 + $0x8] sm:$0xff]
    %v80 = vld [vmem:[#allocation9 + $0x10] sm:$0x1]
    %v81 = vld [vmem:[#allocation9 + $0x11] sm:$0x1]
    %v82 = vperm.slane %v80, 0
    %vm83 = vcmask 130048
    %v85 = vsel %vm83, %v77, 0
    %87 = vmatpush.msra.mxu0 0.0
    %88 = vmatpush.msra.mxu0 0.0
    %89 = vmatpush.msra.mxu0 0.0
    %90 = vmatpush.msra.mxu0 0.0
    %91 = vmatpush.msra.mxu0 0.0
    %92 = vmatpush.msra.mxu0 0.0
    %93 = vmatpush.msra.mxu0 0.0
    %94 = vmatpush.msra.mxu0 0.0
    %95 = vmatpush.msra.mxu0 0.0
    %96 = vmatpush.msra.mxu0 0.0
    %97 = vmatpush.msra.mxu0 0.0
    %98 = vmatpush.msra.mxu0 0.0
    %99 = vmatpush.msra.mxu0 0.0
    %100 = vmatpush.msra.mxu0 0.0
    %101 = vmatpush.msra.mxu0 %v79
    %102 = vmatpush.msra.mxu0 %v78
    %103 = vmatmul.f32.gmra.mxu0 %v85
    %v104 = vpop.f32.mrf.mxu0
    %v105 = vadd.f32 %v82, %v104
    %106 = vdwg.mxu0
    %v107 = vmax.f32 %v105, 0.0
    %v108 = vperm.slane %v81, 0
    %v109 = vmul.f32 %v107, %v108
    %vm110 = vcmask 1045504
    %v111 = vsel %vm110, %v109, 0.0
    %112 = vadd.xlane.f32.xlu0 %v111
    %v113 = vpop.xlane.xlu0 %112
    %s114 = sld [smem:[#allocation3]]
    %v115 = vstv %s114
    %v116 = vadd.f32 %v113, %v115
    %v117 = vlaneseq
    %v118 = vshrl.u32 %v117, 7
    %vm119 = vcmp.ge.s32.totalorder %v118, 2
    %vm120 = vcmp.lt.s32.totalorder %v118, 4
    %vm121 = vmand %vm119, %vm120
    %v122 = vsel %vm121, 0.0, 1.0
    %v123 = vsub.f32 %v116, %v122
    %v124 = vand.u32 2147483647, %v123
    %vm125 = vcmp.lt.f32.partialorder %v124, 1.0
    %v126 = vmul.f32 %v123, 0.5
    %v127 = vmul.f32 %v126, %v123
    %v128 = vsub.f32 %v124, 0.5
    %v129 = vsel %vm125, %v127, %v128
    %vm130 = vcmp.lt.s32.totalorder %v118, 2
    %v131 = vsel %vm130, 1, 0
    %v132 = vcvt.s32.f32 %v131
    %v133 = vsub.f32 1.0, %v132
    %v134 = vmul.f32 %v129, %v132
    %vm135 = vcmask 5120
    %v136 = vsel %vm135, %v134, 0.0
    %137 = vadd.xlane.f32.xlu0 %v136
    %v138 = vpop.xlane.xlu0 %137
    %v139 = vrot.slane %v138, 4
    %v140 = vadd.f32 %v138, %v139
    %v141 = vrot.slane %v140, 2
    %v142 = vadd.f32 %v140, %v141
    %v143 = vrot.slane %v142, 1
    %v144 = vadd.f32 %v142, %v143
    %s145 = vtos %v144
    %s146 = smul.f32 %s145, 0.01
    %v147 = vrcp.pop 2.0
    %v148 = vmul.f32 2.0, %v147
    %v149 = vsub.f32 1.0, %v148
    %v150 = vmul.f32 %v147, %v149
    %v151 = vadd.f32 %v147, %v150
    %vm152 = vweird.f32 %v147
    %v153 = vsel %vm152, %v147, %v151
    %s154 = vtos %v153
    %s155 = smul.f32 %s146, %s154
    %s156 = scalar_lea.smem [#allocation10], 0
    %157 = sst [smem:[%s156]] %s155
    %v158 = vmul.f32 %v129, %v133
    %v159 = vsel %vm135, %v158, 0.0
    %160 = vadd.xlane.f32.xlu0 %v159
    %v161 = vpop.xlane.xlu0 %160
    %v162 = vrot.slane %v161, 4
    %v163 = vadd.f32 %v161, %v162
    %v164 = vrot.slane %v163, 2
    %v165 = vadd.f32 %v163, %v164
    %v166 = vrot.slane %v165, 1
    %v167 = vadd.f32 %v165, %v166
    %s168 = vtos %v167
    %s169 = smul.f32 %s168, 0.01
    %v170 = vrcp.pop 4.0
    %v171 = vmul.f32 4.0, %v170
    %v172 = vsub.f32 1.0, %v171
    %v173 = vmul.f32 %v170, %v172
    %v174 = vadd.f32 %v170, %v173
    %vm175 = vweird.f32 %v170
    %v176 = vsel %vm175, %v170, %v174
    %s177 = vtos %v176
    %s178 = smul.f32 %s169, %s177
    %s179 = scalar_lea.smem [#allocation11], 0
    %180 = sst [smem:[%s179]] %s178
    // Predicated region
    $region34: #{tpu_custom_call.1} parent=1 // pred_check
      _
    $region35: #{tpu_custom_call.1} parent=1 // pred_check_branch
      %182 = sbr.rel (0) target = $region37
    $region36: #{tpu_custom_call.1} parent=1 // pred_region
      %184 = vsyncadd [#allocation6], 0
      %s186 = sshll.u32 %s5, 4
      %s187 = int_to_ptr.hbm [resolvable:$true] %s186
      %189 = dma.smem_to_hbm [#allocation10], 16, %s187, [#allocation6]
    $region37: #{tpu_custom_call.1} parent=1 // pred_fallthru
      _
    // Predicated region
    $region38: #{tpu_custom_call.1} parent=1 // pred_check
      _
    $region39: #{tpu_custom_call.1} parent=1 // pred_check_branch
      %191 = sbr.rel (0) target = $region41
    $region40: #{tpu_custom_call.1} parent=1 // pred_region
      %193 = vsyncadd [#allocation12], 0
      %s195 = sshll.u32 %s6, 4
      %s196 = int_to_ptr.hbm [resolvable:$true] %s195
      %198 = dma.smem_to_hbm [#allocation11], 16, %s196, [#allocation12]
    $region41: #{tpu_custom_call.1} parent=1 // pred_fallthru
      _
    // Predicated region
    $region42: #{tpu_custom_call.1} parent=1 // pred_check
      _
    $region43: #{tpu_custom_call.1} parent=1 // pred_check_branch
      %200 = sbr.rel (0) target = $region45
    $region44: #{tpu_custom_call.1} parent=1 // pred_region
      %202 = dma.done [#allocation6], 16
    $region45: #{tpu_custom_call.1} parent=1 // pred_fallthru
      _
    // Predicated region
    $region46: #{tpu_custom_call.1} parent=1 // pred_check
      _
    $region47: #{tpu_custom_call.1} parent=1 // pred_check_branch
      %204 = sbr.rel (0) target = $region49
    $region48: #{tpu_custom_call.1} parent=1 // pred_region
      %206 = dma.done [#allocation12], 16
    $region49: #{tpu_custom_call.1} parent=1 // pred_fallthru
      _
    %207 = sfence
    %208 = vsyncpa [#allocation5], 1
    %209 = vsyncpa [#allocation8], 1
    %210 = vsyncpa [#allocation6], 1
    %211 = vsyncpa [#allocation12], 1

</llo_original>
